<compile_context>
chip_gen: v7x
topology: tpu7x:2x2x1
jax: 0.10.0
libtpu: 0.0.40
codegen_flags: <defaults>
</compile_context>

<pallas_src>
import jax
import jax.numpy as jnp
from jax.experimental import pallas as pl
from jax.experimental.pallas import tpu as pltpu

K_SIZE = 3
STRIDE = 1

# Target bytes for one input block per grid step. Double-buffered in+out blocks plus the
# separable-max temporaries land around ~20-25 MiB, under the 32 MiB scoped VMEM limit.
_IN_BLOCK_BYTES_TARGET = 4 * 1024 * 1024
_VMEM_LIMIT_BYTES = 32 * 1024 * 1024


def _maxpool_kernel(x_ref, o_ref):
    # x_ref: (c_blk, H, W); o_ref: (c_blk, H_out, W_out)
    _, h_out, w_out = o_ref.shape
    x = x_ref[...]

    # Pass 1: max over the K_SIZE shifts along W (lane axis) -> running row max.
    row = x[:, :, 0:w_out]
    for dj in range(1, K_SIZE):
        row = jnp.maximum(row, x[:, :, dj:dj + w_out])

    # Pass 2: max over the K_SIZE shifts along H (sublane/row axis).
    out = row[:, 0:h_out, :]
    for di in range(1, K_SIZE):
        out = jnp.maximum(out, row[:, di:di + h_out, :])

    o_ref[...] = out


def maxpool_block(x):
    """x: (N, C, H, W) -> (N, C, H_out, W_out); MaxPool2d(kernel_size=3, stride=1)."""
    if STRIDE != 1:
        raise NotImplementedError("kernel implements stride=1 (the module's default)")
    n, c, h, w = x.shape
    if h < K_SIZE or w < K_SIZE:
        raise ValueError(f"spatial dims ({h},{w}) must be >= kernel size {K_SIZE}")
    h_out = (h - K_SIZE) // STRIDE + 1
    w_out = (w - K_SIZE) // STRIDE + 1

    nc = n * c
    x_flat = x.reshape(nc, h, w)

    itemsize = jnp.dtype(x.dtype).itemsize
    plane_bytes = h * w * itemsize
    # TODO(synk): for planes too large for the VMEM budget even at c_blk=1 (e.g. f32
    # 2048x2048), tile H with a 2-row halo via pl.Element index maps.
    c_blk = min(nc, max(1, _IN_BLOCK_BYTES_TARGET // plane_bytes))
    if nc > 1:
        # Keep at least 2 grid steps so both v7x TensorCores get a balanced shard.
        c_blk = min(c_blk, pl.cdiv(nc, 2))
    c_blk = max(1, c_blk)
    grid = (pl.cdiv(nc, c_blk),)

    out_flat = pl.pallas_call(
        _maxpool_kernel,
        out_shape=jax.ShapeDtypeStruct((nc, h_out, w_out), x.dtype),
        grid=grid,
        in_specs=[pl.BlockSpec((c_blk, h, w), lambda i: (i, 0, 0))],
        out_specs=pl.BlockSpec((c_blk, h_out, w_out), lambda i: (i, 0, 0)),
        compiler_params=pltpu.CompilerParams(
            dimension_semantics=("parallel",),
            vmem_limit_bytes=_VMEM_LIMIT_BYTES,
        ),
    )(x_flat)

    return out_flat.reshape(n, c, h_out, w_out)


def _reference_maxpool(x):
    # Pure-JAX reference (same semantics as nn.MaxPool2d(3, stride=1), no padding).
    n, c, h, w = x.shape
    h_out, w_out = h - K_SIZE + 1, w - K_SIZE + 1
    acc = None
    for di in range(K_SIZE):
        for dj in range(K_SIZE):
            win = x[:, :, di:di + h_out, dj:dj + w_out]
            acc = win if acc is None else jnp.maximum(acc, win)
    return acc


if __name__ == "__main__":
    key = jax.random.PRNGKey(0)
    # Small shape consistent with the module: batch=2, channels=4, spatial=16x16.
    x = jax.random.normal(key, (2, 4, 16, 16), dtype=jnp.float32)

    out = maxpool_block(x)
    jax.block_until_ready(out)

    ref = _reference_maxpool(x)
    assert out.shape == (2, 4, 14, 14), out.shape
    assert jnp.allclose(out, ref), "mismatch vs reference"

    print("KERNEL_OK")
</pallas_src>

<mosaic_0001>
module attributes {stable_mosaic.version = 11 : i64} {
  func.func @_maxpool_kernel(%arg0: i32, %arg1: memref<4x16x16xf32, #tpu.memory_space<vmem>>, %arg2: memref<4x14x14xf32, #tpu.memory_space<vmem>>) attributes {dimension_semantics = [#tpu.dimension_semantics<parallel>], iteration_bounds = array<i64: 2>, scalar_prefetch = 0 : i64, scratch_operands = 0 : i64, tpu.core_type = #tpu.core_type<tc>, window_params = [{transform_indices = @transform_0, window_bounds = array<i64: 4, 16, 16>}, {transform_indices = @transform_1, window_bounds = array<i64: 4, 14, 14>}]} {
    %c0 = arith.constant 0 : index
    %c0_0 = arith.constant 0 : index
    %c0_1 = arith.constant 0 : index
    %0 = vector.load %arg1[%c0, %c0_0, %c0_1] : memref<4x16x16xf32, #tpu.memory_space<vmem>>, vector<4x16x16xf32>
    %1 = vector.extract_strided_slice %0 {offsets = [0, 0, 0], sizes = [4, 16, 14], strides = [1, 1, 1]} : vector<4x16x16xf32> to vector<4x16x14xf32>
    %2 = vector.extract_strided_slice %0 {offsets = [0, 0, 1], sizes = [4, 16, 14], strides = [1, 1, 1]} : vector<4x16x16xf32> to vector<4x16x14xf32>
    %3 = arith.maximumf %1, %2 : vector<4x16x14xf32>
    %4 = vector.extract_strided_slice %0 {offsets = [0, 0, 2], sizes = [4, 16, 14], strides = [1, 1, 1]} : vector<4x16x16xf32> to vector<4x16x14xf32>
    %5 = arith.maximumf %3, %4 : vector<4x16x14xf32>
    %6 = vector.extract_strided_slice %5 {offsets = [0, 0, 0], sizes = [4, 14, 14], strides = [1, 1, 1]} : vector<4x16x14xf32> to vector<4x14x14xf32>
    %7 = vector.extract_strided_slice %5 {offsets = [0, 1, 0], sizes = [4, 14, 14], strides = [1, 1, 1]} : vector<4x16x14xf32> to vector<4x14x14xf32>
    %8 = arith.maximumf %6, %7 : vector<4x14x14xf32>
    %9 = vector.extract_strided_slice %5 {offsets = [0, 2, 0], sizes = [4, 14, 14], strides = [1, 1, 1]} : vector<4x16x14xf32> to vector<4x14x14xf32>
    %10 = arith.maximumf %8, %9 : vector<4x14x14xf32>
    %c0_2 = arith.constant 0 : index
    %c0_3 = arith.constant 0 : index
    %c0_4 = arith.constant 0 : index
    %11 = vector.load %arg2[%c0_2, %c0_3, %c0_4] : memref<4x14x14xf32, #tpu.memory_space<vmem>>, vector<4x14x14xf32>
    tpu.vector_store %arg2[%c0_2, %c0_3, %c0_4], %10 {strides = array<i32>} : memref<4x14x14xf32, #tpu.memory_space<vmem>>, vector<4x14x14xf32>,
    return
  }
  func.func @transform_0(%arg0: i32) -> (i32, i32, i32) {
    %c0_i32 = arith.constant 0 : i32
    %c0_i32_0 = arith.constant 0 : i32
    %c0_i32_1 = arith.constant 0 : i32
    return %arg0, %c0_i32, %c0_i32_0 : i32, i32, i32
  }
  func.func @transform_1(%arg0: i32) -> (i32, i32, i32) {
    %c0_i32 = arith.constant 0 : i32
    %c0_i32_0 = arith.constant 0 : i32
    %c0_i32_1 = arith.constant 0 : i32
    return %arg0, %c0_i32, %c0_i32_0 : i32, i32, i32
  }
}

</mosaic_0001>

<llo_original>
// kernel: tpu_custom_call.1
$region0: #{tpu_custom_call.1}
  #allocation0 [shape = 'u32[]', space=smem, size = 0x4, offset = 0x4, fixed_abs, tag = 'smem constant byte address 0x4 - core index']
  #allocation1 [shape = 'u32[144,128]{1,0:T(1,128)}', space=vmem, size = 0x12000, scoped, tag = 'internal scratch']
  %s0 = inlined_call_operand.hbm [shape: f32[8,16,16], index: 0, kind: input, shape index: {}]
  %s1 = inlined_call_operand.vmem [shape: f32[8,14,14], index: 1, kind: output, shape index: {}]
  %s2 = sld [smem:[#allocation0]]
  $region41: #{tpu_custom_call.1} parent=0
    _
  %s4 = ssub.s32 1, %s2
  %s5 = scalar_select 0, %s4, %s2
  $region1: #{tpu_custom_call.1} parent=0
    #allocation2 [shape = 'u8[65536]{0}', space=vmem, size = 0x10000, scoped, tag = 'input window, operand 0']
    #allocation3 [shape = 's32[2]{0}', space=sflag, size = 0x8, scoped, tag = 'scoped memory for tpu_custom_call.1']
    %6 = vsyncpa [#allocation3], 0
    %s7 = scalar_lea.sflag [#allocation3], 1
    %8 = vsyncpa %s7, 0
    loop: start=0, step=1, limit=4
    $region2: #{tpu_custom_call.1} parent=1 // loop_pre_header
      _
    $region3: #{tpu_custom_call.1} parent=1 // loop_header
      %s10 = sphi 0, %s14
      %p11 = scmp.ge.s32.totalorder %s10, 4
      %s20 = sphi 0, %s22
      %s23 = sphi 0, %s20
      %s24 = sphi 0, %s23
      %s40 = sphi 0, %s24
      %s46 = sphi 0, %s48
      %s49 = sphi 0, %s46
      %s50 = sphi 0, %s49
      %s66 = sphi 0, %s50
    $region4: #{tpu_custom_call.1} parent=1 // loop_header_branch
      %13 = sbr.rel (%p11) target = $region8
    $region5: #{tpu_custom_call.1} parent=1 // loop_body
      %s15 = ssub.s32 %s10, 1
      %s16 = ssub.s32 %s10, 2
      %s17 = sadd.s32 %s10, 1
      %s18 = ssub.s32 %s10, %s17
      %p19 = scmp.eq.s32.totalorder %s18, 0
      %s21 = sadd.s32 %s20, 1
      %s22 = scalar_select %p19, %s20, %s21
      %p25 = pneg %p19
      %p26 = scmp.eq.s32.totalorder %s10, 1
      %p27 = por %p25, %p26
      %p28 = scmp.ne.s32.totalorder %s20, %s23
      %p29 = scmp.eq.s32.totalorder %s10, 0
      %p30 = por %p28, %p29
      %p31 = scmp.ne.s32.totalorder %s20, %s23
      %p32 = scmp.eq.s32.totalorder %s15, 1
      %p33 = por %p31, %p32
      %p34 = scmp.ne.s32.totalorder %s23, %s24
      %p35 = scmp.eq.s32.totalorder %s15, 0
      %p36 = por %p34, %p35
      %p37 = scmp.ne.s32.totalorder %s23, %s24
      %p38 = scmp.eq.s32.totalorder %s16, 1
      %p39 = por %p37, %p38
      %p41 = scmp.ne.s32.totalorder %s24, %s40
      %p42 = scmp.eq.s32.totalorder %s16, 0
      %p43 = por %p41, %p42
      %s44 = ssub.s32 %s10, %s17
      %p45 = scmp.eq.s32.totalorder %s44, 0
      %s47 = sadd.s32 %s46, 1
      %s48 = scalar_select %p45, %s46, %s47
      %p51 = pneg %p45
      %p52 = scmp.eq.s32.totalorder %s10, 1
      %p53 = por %p51, %p52
      %p54 = scmp.ne.s32.totalorder %s46, %s49
      %p55 = scmp.eq.s32.totalorder %s10, 0
      %p56 = por %p54, %p55
      %p57 = scmp.ne.s32.totalorder %s46, %s49
      %p58 = scmp.eq.s32.totalorder %s15, 1
      %p59 = por %p57, %p58
      %p60 = scmp.ne.s32.totalorder %s49, %s50
      %p61 = scmp.eq.s32.totalorder %s15, 0
      %p62 = por %p60, %p61
      %p63 = scmp.ne.s32.totalorder %s49, %s50
      %p64 = scmp.eq.s32.totalorder %s16, 1
      %p65 = por %p63, %p64
      %p67 = scmp.ne.s32.totalorder %s50, %s66
      %p68 = scmp.eq.s32.totalorder %s16, 0
      %p69 = por %p67, %p68
      %p70 = scmp.le.s32.totalorder 1, %s10
      %p71 = scmp.lt.s32.totalorder %s10, 3
      %p72 = pnand %p70, %p71
      %p73 = pneg %p72
      // Predicated region
      $region9: #{tpu_custom_call.1} parent=5 // pred_check
        _
      $region10: #{tpu_custom_call.1} parent=5 // pred_check_branch
        %75 = sbr.rel (%p72) target = $region12
      $region11: #{tpu_custom_call.1} parent=5 // pred_region
        %s76 = ssub.s32 %s10, 1
      $region12: #{tpu_custom_call.1} parent=5 // pred_fallthru
        _
      %p77 = scmp.lt.s32.totalorder %s10, 2
      // Predicated region
      $region13: #{tpu_custom_call.1} parent=5 // pred_check
        %p78 = pneg %p77
      $region14: #{tpu_custom_call.1} parent=5 // pred_check_branch
        %80 = sbr.rel (%p78) target = $region16
      $region15: #{tpu_custom_call.1} parent=5 // pred_region
        // Predicated region
        $region17: #{tpu_custom_call.1} parent=15 // pred_check
          %p81 = pneg %p30
        $region18: #{tpu_custom_call.1} parent=15 // pred_check_branch
          %83 = sbr.rel (%p81) target = $region20
        $region19: #{tpu_custom_call.1} parent=15 // pred_region
          %s84 = sand.u32 %s20, 1
          %s85 = scalar_lea.sflag [#allocation3], %s84
          %s86 = sand.u32 %s20, 1
          %s87 = smul.addr %s86, 64
          %s88 = scalar_lea.vmem [#allocation2], %s87
          %s89 = smul.u32 4, %s10
          %s91 = ssub.s32 1024, 1024
          %92 = vsyncadd %s85, %s91
          %s93 = smul.addr %s89, 2
          %s94 = smul.addr %s93, 128
          %s95 = scalar_lea.hbm %s0, %s94
          %s96 = sshll.u32 %s88, 4
          %s97 = int_to_ptr.vmem [resolvable:$true] %s96
          %102 = dma.hbm_to_vmem [thread:$0]  %s95, 1024, %s97, %s85, 128, 128, 8
        $region20: #{tpu_custom_call.1} parent=15 // pred_fallthru
          _
      $region16: #{tpu_custom_call.1} parent=5 // pred_fallthru
        _
      %p103 = scmp.le.s32.totalorder 1, %s10
      %p104 = scmp.lt.s32.totalorder %s10, 3
      %p105 = pnand %p103, %p104
      %p106 = pneg %p105
      // Predicated region
      $region21: #{tpu_custom_call.1} parent=5 // pred_check
        _
      $region22: #{tpu_custom_call.1} parent=5 // pred_check_branch
        %108 = sbr.rel (%p105) target = $region24
      $region23: #{tpu_custom_call.1} parent=5 // pred_region
        %s109 = ssub.s32 %s10, 1
        %s110 = sand.u32 %s23, 1
        %s111 = scalar_lea.sflag [#allocation3], %s110
        %s112 = sand.u32 %s23, 1
        %s113 = smul.addr %s112, 64
        %s114 = scalar_lea.vmem [#allocation2], %s113
        // Predicated region
        $region25: #{tpu_custom_call.1} parent=23 // pred_check
          %p115 = pneg %p36
        $region26: #{tpu_custom_call.1} parent=23 // pred_check_branch
          %117 = sbr.rel (%p115) target = $region28
        $region27: #{tpu_custom_call.1} parent=23 // pred_region
          %118 = dma.done %s111, 1024
        $region28: #{tpu_custom_call.1} parent=23 // pred_fallthru
          _
        %s119 = sand.u32 %s23, 1
        %s120 = scalar_lea.sflag [#allocation3], %s119
        %s121 = sand.u32 %s23, 1
        %s122 = smul.addr %s121, 64
        %s123 = scalar_lea.vmem [#allocation2], %s122
        %p124 = pneg %p36
        %p125 = pneg %p33
        %p126 = pneg %p62
        %p127 = pneg %p59
        %s128 = smul.u32 4, %s15
        %p129 = scmp.lt.s32.totalorder %s128, 7
        %s130 = scalar_select %p129, %s128, 7
        %s131 = smul.addr %s130, 2
        %s132 = smul.addr %s131, 8
        %s133 = scalar_lea.vmem %s1, %s132
        %s134 = smul.u32 4, %s15
        %s135 = smul.u32 4, %s15
        %p136 = scmp.lt.s32.totalorder %s135, 7
        %s137 = scalar_select %p136, %s135, 7
        %s138 = smul.addr %s137, 2
        %s139 = smul.addr %s138, 8
        %s140 = scalar_lea.vmem %s1, %s139
        %s141 = smul.u32 4, %s15
        %v142 = vld [vmem:[%s114] sm:$0xff]
        %v143 = vld [vmem:[%s114 + $0x8] sm:$0xff]
        %v144 = vld [vmem:[%s114 + $0x10] sm:$0xff]
        %v145 = vld [vmem:[%s114 + $0x18] sm:$0xff]
        %v146 = vld [vmem:[%s114 + $0x20] sm:$0xff]
        %v147 = vld [vmem:[%s114 + $0x28] sm:$0xff]
        %v148 = vld [vmem:[%s114 + $0x30] sm:$0xff]
        %v149 = vld [vmem:[%s114 + $0x38] sm:$0xff]
        %158 = vrot.lane.b32.xlu0 %v142, 127
        %v159 = vpop.permute.xlu0 %158
        %160 = vrot.lane.b32.xlu0 %v143, 127
        %v161 = vpop.permute.xlu0 %160
        %162 = vrot.lane.b32.xlu0 %v144, 127
        %v163 = vpop.permute.xlu0 %162
        %164 = vrot.lane.b32.xlu0 %v145, 127
        %v165 = vpop.permute.xlu0 %164
        %166 = vrot.lane.b32.xlu0 %v146, 127
        %v167 = vpop.permute.xlu0 %166
        %168 = vrot.lane.b32.xlu0 %v147, 127
        %v169 = vpop.permute.xlu0 %168
        %170 = vrot.lane.b32.xlu0 %v148, 127
        %v171 = vpop.permute.xlu0 %170
        %172 = vrot.lane.b32.xlu0 %v149, 127
        %v173 = vpop.permute.xlu0 %172
        %v182 = vmax.f32 %v142, %v159
        %v183 = vmax.f32 %v143, %v161
        %v184 = vmax.f32 %v144, %v163
        %v185 = vmax.f32 %v145, %v165
        %v186 = vmax.f32 %v146, %v167
        %v187 = vmax.f32 %v147, %v169
        %v188 = vmax.f32 %v148, %v171
        %v189 = vmax.f32 %v149, %v173
        %190 = vrot.lane.b32.xlu0 %v142, 126
        %v191 = vpop.permute.xlu0 %190
        %192 = vrot.lane.b32.xlu0 %v143, 126
        %v193 = vpop.permute.xlu0 %192
        %194 = vrot.lane.b32.xlu0 %v144, 126
        %v195 = vpop.permute.xlu0 %194
        %196 = vrot.lane.b32.xlu0 %v145, 126
        %v197 = vpop.permute.xlu0 %196
        %198 = vrot.lane.b32.xlu0 %v146, 126
        %v199 = vpop.permute.xlu0 %198
        %200 = vrot.lane.b32.xlu0 %v147, 126
        %v201 = vpop.permute.xlu0 %200
        %202 = vrot.lane.b32.xlu0 %v148, 126
        %v203 = vpop.permute.xlu0 %202
        %204 = vrot.lane.b32.xlu0 %v149, 126
        %v205 = vpop.permute.xlu0 %204
        %v214 = vmax.f32 %v182, %v191
        %v215 = vmax.f32 %v183, %v193
        %v216 = vmax.f32 %v184, %v195
        %v217 = vmax.f32 %v185, %v197
        %v218 = vmax.f32 %v186, %v199
        %v219 = vmax.f32 %v187, %v201
        %v220 = vmax.f32 %v188, %v203
        %v221 = vmax.f32 %v189, %v205
        %vm230 = vcmask 1046528
        %v231 = vrot.slane %v214, 1
        %v232 = vrot.slane %v215, 1
        %v233 = vsel %vm230, %v231, %v232
        %v234 = vrot.slane %v216, 1
        %v235 = vrot.slane %v217, 1
        %v236 = vsel %vm230, %v234, %v235
        %v237 = vrot.slane %v218, 1
        %v238 = vrot.slane %v219, 1
        %v239 = vsel %vm230, %v237, %v238
        %v240 = vrot.slane %v220, 1
        %v241 = vrot.slane %v221, 1
        %v242 = vsel %vm230, %v240, %v241
        %v251 = vmax.f32 %v214, %v233
        %v252 = vmax.f32 %v215, %v232
        %v253 = vmax.f32 %v216, %v236
        %v254 = vmax.f32 %v217, %v235
        %v255 = vmax.f32 %v218, %v239
        %v256 = vmax.f32 %v219, %v238
        %v257 = vmax.f32 %v220, %v242
        %v258 = vmax.f32 %v221, %v241
        %vm259 = vcmask 1045504
        %v260 = vrot.slane %v214, 2
        %v261 = vrot.slane %v215, 2
        %v262 = vsel %vm259, %v260, %v261
        %v263 = vrot.slane %v216, 2
        %v264 = vrot.slane %v217, 2
        %v265 = vsel %vm259, %v263, %v264
        %v266 = vrot.slane %v218, 2
        %v267 = vrot.slane %v219, 2
        %v268 = vsel %vm259, %v266, %v267
        %v269 = vrot.slane %v220, 2
        %v270 = vrot.slane %v221, 2
        %v271 = vsel %vm259, %v269, %v270
        %v280 = vmax.f32 %v251, %v262
        %v281 = vmax.f32 %v252, %v261
        %v282 = vmax.f32 %v253, %v265
        %v283 = vmax.f32 %v254, %v264
        %v284 = vmax.f32 %v255, %v268
        %v285 = vmax.f32 %v256, %v267
        %v286 = vmax.f32 %v257, %v271
        %v287 = vmax.f32 %v258, %v270
        %vm288 = vcmask 113664
        %289 = vst.msk [vmem:[%s140] sm:$0xff] %vm288, %v280
        %vm290 = vcmask 111616
        %291 = vst.msk [vmem:[%s140 + $0x8] sm:$0x3f] %vm290, %v281
        %292 = vst.msk [vmem:[%s140 + $0x10] sm:$0xff] %vm288, %v282
        %293 = vst.msk [vmem:[%s140 + $0x18] sm:$0x3f] %vm290, %v283
        %294 = vst.msk [vmem:[%s140 + $0x20] sm:$0xff] %vm288, %v284
        %295 = vst.msk [vmem:[%s140 + $0x28] sm:$0x3f] %vm290, %v285
        %296 = vst.msk [vmem:[%s140 + $0x30] sm:$0xff] %vm288, %v286
        %297 = vst.msk [vmem:[%s140 + $0x38] sm:$0x3f] %vm290, %v287
        %s298 = smul.u32 4, %s15
        %p299 = scmp.lt.s32.totalorder %s298, 7
        %s300 = scalar_select %p299, %s298, 7
        %s301 = smul.addr %s300, 2
        %s302 = smul.addr %s301, 8
        %s303 = scalar_lea.vmem %s1, %s302
        // Predicated region
        $region29: #{tpu_custom_call.1} parent=23 // pred_check
          %p304 = pneg %p59
        $region30: #{tpu_custom_call.1} parent=23 // pred_check_branch
          %306 = sbr.rel (%p304) target = $region32
        $region31: #{tpu_custom_call.1} parent=23 // pred_region
          %s307 = smul.u32 4, %s15
        $region32: #{tpu_custom_call.1} parent=23 // pred_fallthru
          _
      $region24: #{tpu_custom_call.1} parent=5 // pred_fallthru
        _
      %p308 = scmp.le.s32.totalorder 2, %s10
      // Predicated region
      $region33: #{tpu_custom_call.1} parent=5 // pred_check
        %p309 = pneg %p308
      $region34: #{tpu_custom_call.1} parent=5 // pred_check_branch
        %311 = sbr.rel (%p309) target = $region36
      $region35: #{tpu_custom_call.1} parent=5 // pred_region
        %s312 = ssub.s32 %s10, 2
        // Predicated region
        $region37: #{tpu_custom_call.1} parent=35 // pred_check
          %p313 = pneg %p65
        $region38: #{tpu_custom_call.1} parent=35 // pred_check_branch
          %315 = sbr.rel (%p313) target = $region40
        $region39: #{tpu_custom_call.1} parent=35 // pred_region
          %s316 = smul.u32 4, %s16
          %p317 = scmp.lt.s32.totalorder %s316, 7
          %s318 = scalar_select %p317, %s316, 7
          %s319 = smul.addr %s318, 2
          %s320 = smul.addr %s319, 8
          %s321 = scalar_lea.vmem %s1, %s320
        $region40: #{tpu_custom_call.1} parent=35 // pred_fallthru
          _
      $region36: #{tpu_custom_call.1} parent=5 // pred_fallthru
        _
    $region6: #{tpu_custom_call.1} parent=1 // loop_footer
      %s14 = sadd.s32 1, %s10
    $region7: #{tpu_custom_call.1} parent=1 // loop_footer_branch
      %9 = sbr.rel target = $region3
    $region8: #{tpu_custom_call.1} parent=1 // loop_exit
      _
    %322 = vsyncpa [#allocation3], 1
    %s323 = scalar_lea.sflag [#allocation3], 1
    %324 = vsyncpa %s323, 1

</llo_original>
